<compile_context>
chip_gen: v7x
topology: tpu7x:2x2x1
jax: 0.10.0
libtpu: 0.0.40
codegen_flags: <defaults>
</compile_context>

<pallas_src>
import jax
import jax.numpy as jnp
from jax.experimental import pallas as pl
from jax.experimental.pallas import tpu as pltpu


def _moving_avg_freq_kernel(kr_ref, ki_ref, xr_ref, xi_ref, y_ref):
    # kr/ki: (tile_s, 1)   xr/xi: (tile_s, N)   y: (tile_s, 2*N)
    kr = kr_ref[...]
    ki = ki_ref[...]
    xr = xr_ref[...]
    xi = xi_ref[...]

    # complex diagonal multiply: (kr + i*ki) * (xr + i*xi)
    yr = kr * xr - ki * xi
    yi = kr * xi + ki * xr

    # single lane-dense store: [real | imag] stacked along lanes
    y_ref[...] = jnp.concatenate([yr, yi], axis=-1)


def make_moving_avg_freq_Kvec(kernel_size: int, seq_length: int,
                              sample_rate: float = 1.0) -> jax.Array:
    """Diagonal of K, mirroring MovingAvgFreq.__init__ exactly (K = diag(Kvec))."""
    freq = jnp.pi * jnp.linspace(0.0, seq_length - 1, seq_length) / seq_length
    omega = 2.0 * jnp.pi * freq / sample_rate
    coeff = jnp.exp(-1j * omega * (kernel_size - 1) / 2) / kernel_size
    omega_safe = jnp.where(omega == 0, 1e-5, omega)
    Kvec = coeff * jnp.sin(omega_safe * kernel_size / 2) / jnp.sin(omega_safe / 2)
    return Kvec.astype(jnp.complex64)  # (S,) complex


def _pick_tile_s(S: int) -> int:
    """Largest sublane tile that divides S; falls back to the full axis."""
    if S <= 512:
        return S
    for cand in (512, 256, 128, 64, 32, 16, 8):
        if S % cand == 0:
            return cand
    return S


def moving_avg_freq(x: jax.Array, Kvec: jax.Array) -> jax.Array:
    """Apply y[b] = diag(Kvec) @ x[b] for complex x of shape (B, S, C)."""
    B, S, C = x.shape
    N = B * C

    kr = jnp.real(Kvec).astype(jnp.float32).reshape(S, 1)
    ki = jnp.imag(Kvec).astype(jnp.float32).reshape(S, 1)

    # Fold batch+channels into lanes: (B, S, C) -> (S, B*C)
    xr = jnp.transpose(jnp.real(x).astype(jnp.float32), (1, 0, 2)).reshape(S, N)
    xi = jnp.transpose(jnp.imag(x).astype(jnp.float32), (1, 0, 2)).reshape(S, N)

    tile_s = _pick_tile_s(S)
    grid = (S // tile_s,)

    y = pl.pallas_call(
        _moving_avg_freq_kernel,
        out_shape=jax.ShapeDtypeStruct((S, 2 * N), jnp.float32),
        grid_spec=pltpu.PrefetchScalarGridSpec(
            num_scalar_prefetch=0,
            grid=grid,
            in_specs=[
                pl.BlockSpec((tile_s, 1), lambda i: (i, 0)),   # Kvec real
                pl.BlockSpec((tile_s, 1), lambda i: (i, 0)),   # Kvec imag
                pl.BlockSpec((tile_s, N), lambda i: (i, 0)),   # x real (S, B*C)
                pl.BlockSpec((tile_s, N), lambda i: (i, 0)),   # x imag (S, B*C)
            ],
            out_specs=pl.BlockSpec((tile_s, 2 * N), lambda i: (i, 0)),
        ),
        compiler_params=pltpu.CompilerParams(
            dimension_semantics=("parallel",)),
    )(kr, ki, xr, xi)

    # Unpack stacked [real | imag] slab and restore (B, S, C)
    yr = jnp.transpose(y[:, :N].reshape(S, B, C), (1, 0, 2))
    yi = jnp.transpose(y[:, N:].reshape(S, B, C), (1, 0, 2))
    return (yr + 1j * yi).astype(jnp.complex64)

# TODO(synk): real-valued input path (real_imag_to_complex_freq /
# complex_freq_to_real_imag) is not implemented — those helpers are not defined
# in the reference module; only the complex-tensor branch of forward() is covered.


if __name__ == "__main__":
    # Small shapes consistent with the module: batch=2, seq_length=16, channels=8
    B, S, C = 2, 16, 8
    kernel_size = 4

    Kvec = make_moving_avg_freq_Kvec(kernel_size=kernel_size, seq_length=S,
                                     sample_rate=1.0)

    key = jax.random.PRNGKey(0)
    k1, k2 = jax.random.split(key)
    xr = jax.random.normal(k1, (B, S, C), dtype=jnp.float32)
    xi = jax.random.normal(k2, (B, S, C), dtype=jnp.float32)
    x = (xr + 1j * xi).astype(jnp.complex64)

    y = moving_avg_freq(x, Kvec)
    jax.block_until_ready(y)

    # reference check in plain JAX against the *dense* K = diag(Kvec), as the
    # PyTorch module materializes it (batched K @ x)
    K = jnp.diag(Kvec).astype(jnp.complex64)
    y_ref = jnp.einsum("ij,bjc->bic", K, x)
    assert jnp.allclose(y, y_ref, rtol=1e-3, atol=1e-3), "mismatch vs reference"

    print("KERNEL_OK")
</pallas_src>

<mosaic_0001>
module attributes {stable_mosaic.version = 11 : i64} {
  func.func @_moving_avg_freq_kernel(%arg0: i32, %arg1: memref<16x1xf32, #tpu.memory_space<vmem>>, %arg2: memref<16x1xf32, #tpu.memory_space<vmem>>, %arg3: memref<16x16xf32, #tpu.memory_space<vmem>>, %arg4: memref<16x16xf32, #tpu.memory_space<vmem>>, %arg5: memref<16x32xf32, #tpu.memory_space<vmem>>) attributes {dimension_semantics = [#tpu.dimension_semantics<parallel>], iteration_bounds = array<i64: 1>, scalar_prefetch = 0 : i64, scratch_operands = 0 : i64, tpu.core_type = #tpu.core_type<tc>, window_params = [{transform_indices = @transform_0, window_bounds = array<i64: 16, 1>}, {transform_indices = @transform_1, window_bounds = array<i64: 16, 1>}, {transform_indices = @transform_2, window_bounds = array<i64: 16, 16>}, {transform_indices = @transform_3, window_bounds = array<i64: 16, 16>}, {transform_indices = @transform_4, window_bounds = array<i64: 16, 32>}]} {
    %c0 = arith.constant 0 : index
    %c0_0 = arith.constant 0 : index
    %0 = vector.load %arg1[%c0, %c0_0] : memref<16x1xf32, #tpu.memory_space<vmem>>, vector<16x1xf32>
    %c0_1 = arith.constant 0 : index
    %c0_2 = arith.constant 0 : index
    %1 = vector.load %arg2[%c0_1, %c0_2] : memref<16x1xf32, #tpu.memory_space<vmem>>, vector<16x1xf32>
    %c0_3 = arith.constant 0 : index
    %c0_4 = arith.constant 0 : index
    %2 = vector.load %arg3[%c0_3, %c0_4] : memref<16x16xf32, #tpu.memory_space<vmem>>, vector<16x16xf32>
    %c0_5 = arith.constant 0 : index
    %c0_6 = arith.constant 0 : index
    %3 = vector.load %arg4[%c0_5, %c0_6] : memref<16x16xf32, #tpu.memory_space<vmem>>, vector<16x16xf32>
    %4 = vector.broadcast %0 : vector<16x1xf32> to vector<16x16xf32>
    %5 = arith.mulf %4, %2 : vector<16x16xf32>
    %6 = vector.broadcast %1 : vector<16x1xf32> to vector<16x16xf32>
    %7 = arith.mulf %6, %3 : vector<16x16xf32>
    %8 = arith.subf %5, %7 : vector<16x16xf32>
    %9 = vector.broadcast %0 : vector<16x1xf32> to vector<16x16xf32>
    %10 = arith.mulf %9, %3 : vector<16x16xf32>
    %11 = vector.broadcast %1 : vector<16x1xf32> to vector<16x16xf32>
    %12 = arith.mulf %11, %2 : vector<16x16xf32>
    %13 = arith.addf %10, %12 : vector<16x16xf32>
    %14 = tpu.concatenate %8, %13 in 1 : vector<16x16xf32>, vector<16x16xf32> -> vector<16x32xf32>
    %c0_7 = arith.constant 0 : index
    %c0_8 = arith.constant 0 : index
    %15 = vector.load %arg5[%c0_7, %c0_8] : memref<16x32xf32, #tpu.memory_space<vmem>>, vector<16x32xf32>
    tpu.vector_store %arg5[%c0_7, %c0_8], %14 {strides = array<i32>} : memref<16x32xf32, #tpu.memory_space<vmem>>, vector<16x32xf32>,
    return
  }
  func.func @transform_0(%arg0: i32) -> (i32, i32) {
    %c0_i32 = arith.constant 0 : i32
    %c0_i32_0 = arith.constant 0 : i32
    return %arg0, %c0_i32 : i32, i32
  }
  func.func @transform_1(%arg0: i32) -> (i32, i32) {
    %c0_i32 = arith.constant 0 : i32
    %c0_i32_0 = arith.constant 0 : i32
    return %arg0, %c0_i32 : i32, i32
  }
  func.func @transform_2(%arg0: i32) -> (i32, i32) {
    %c0_i32 = arith.constant 0 : i32
    %c0_i32_0 = arith.constant 0 : i32
    return %arg0, %c0_i32 : i32, i32
  }
  func.func @transform_3(%arg0: i32) -> (i32, i32) {
    %c0_i32 = arith.constant 0 : i32
    %c0_i32_0 = arith.constant 0 : i32
    return %arg0, %c0_i32 : i32, i32
  }
  func.func @transform_4(%arg0: i32) -> (i32, i32) {
    %c0_i32 = arith.constant 0 : i32
    %c0_i32_0 = arith.constant 0 : i32
    return %arg0, %c0_i32 : i32, i32
  }
}

</mosaic_0001>

<llo_original>
// kernel: tpu_custom_call.1
$region0: #{tpu_custom_call.1}
  #allocation0 [shape = 'u32[]', space=smem, size = 0x4, offset = 0x4, fixed_abs, tag = 'smem constant byte address 0x4 - core index']
  #allocation1 [shape = 'u32[144,128]{1,0:T(1,128)}', space=vmem, size = 0x12000, scoped, tag = 'internal scratch']
  %s0 = inlined_call_operand.vmem [shape: f32[16,1], index: 0, kind: input, shape index: {}]
  %s1 = inlined_call_operand.vmem [shape: f32[16,1], index: 1, kind: input, shape index: {}]
  %s2 = inlined_call_operand.vmem [shape: f32[16,16], index: 2, kind: input, shape index: {}]
  %s3 = inlined_call_operand.vmem [shape: f32[16,16], index: 3, kind: input, shape index: {}]
  %s4 = inlined_call_operand.hbm [shape: f32[16,32], index: 4, kind: output, shape index: {}]
  %s5 = sld [smem:[#allocation0]]
  $region26: #{tpu_custom_call.1} parent=0
    _
  %s7 = ssub.s32 1, %s5
  %s8 = scalar_select 0, %s7, %s5
  $region1: #{tpu_custom_call.1} parent=0
    #allocation2 [shape = 'u8[8192]{0}', space=vmem, size = 0x2000, scoped, tag = 'output window, operand 0, single buffered']
    #allocation3 [shape = 's32[1]{0}', space=sflag, size = 0x4, scoped, tag = 'scoped memory for tpu_custom_call.1']
    %9 = vsyncpa [#allocation3], 0
    // Predicated region
    $region2: #{tpu_custom_call.1} parent=1 // pred_check
      _
    $region3: #{tpu_custom_call.1} parent=1 // pred_check_branch
      %11 = sbr.rel (0) target = $region5
    $region4: #{tpu_custom_call.1} parent=1 // pred_region
      _
    $region5: #{tpu_custom_call.1} parent=1 // pred_fallthru
      _
    // Predicated region
    $region6: #{tpu_custom_call.1} parent=1 // pred_check
      _
    $region7: #{tpu_custom_call.1} parent=1 // pred_check_branch
      %13 = sbr.rel (0) target = $region9
    $region8: #{tpu_custom_call.1} parent=1 // pred_region
      _
    $region9: #{tpu_custom_call.1} parent=1 // pred_fallthru
      _
    // Predicated region
    $region10: #{tpu_custom_call.1} parent=1 // pred_check
      _
    $region11: #{tpu_custom_call.1} parent=1 // pred_check_branch
      %15 = sbr.rel (0) target = $region13
    $region12: #{tpu_custom_call.1} parent=1 // pred_region
      _
    $region13: #{tpu_custom_call.1} parent=1 // pred_fallthru
      _
    // Predicated region
    $region14: #{tpu_custom_call.1} parent=1 // pred_check
      _
    $region15: #{tpu_custom_call.1} parent=1 // pred_check_branch
      %17 = sbr.rel (0) target = $region17
    $region16: #{tpu_custom_call.1} parent=1 // pred_region
      _
    $region17: #{tpu_custom_call.1} parent=1 // pred_fallthru
      _
    %v18 = vld [vmem:[%s0] sm:$0xff]
    %v19 = vld [vmem:[%s0 + $0x8] sm:$0xff]
    %v20 = vld [vmem:[%s1] sm:$0xff]
    %v21 = vld [vmem:[%s1 + $0x8] sm:$0xff]
    %v22 = vld [vmem:[%s2] sm:$0xff]
    %v23 = vld [vmem:[%s2 + $0x8] sm:$0xff]
    %v24 = vld [vmem:[%s3] sm:$0xff]
    %v25 = vld [vmem:[%s3 + $0x8] sm:$0xff]
    %27 = vset.pattern.permute.xlu0 0
    %28 = vperm.xlu0 %27, %v18
    %v29 = vpop.permute.xlu0 %28
    %32 = vset.pattern.permute.xlu0 0
    %33 = vperm.xlu0 %32, %v19
    %v34 = vpop.permute.xlu0 %33
    %v36 = vmul.f32 %v29, %v22
    %v37 = vmul.f32 %v34, %v23
    %39 = vset.pattern.permute.xlu0 0
    %40 = vperm.xlu0 %39, %v20
    %v41 = vpop.permute.xlu0 %40
    %44 = vset.pattern.permute.xlu0 0
    %45 = vperm.xlu0 %44, %v21
    %v46 = vpop.permute.xlu0 %45
    %v48 = vmul.f32 %v41, %v24
    %v49 = vmul.f32 %v46, %v25
    %v50 = vsub.f32 %v36, %v48
    %v51 = vsub.f32 %v37, %v49
    %v52 = vmul.f32 %v29, %v24
    %v53 = vmul.f32 %v34, %v25
    %v54 = vmul.f32 %v41, %v22
    %v55 = vmul.f32 %v46, %v23
    %v56 = vadd.f32 %v52, %v54
    %v57 = vadd.f32 %v53, %v55
    %60 = vrot.lane.b32.xlu0 %v56, 16
    %v61 = vpop.permute.xlu0 %60
    %62 = vrot.lane.b32.xlu0 %v57, 16
    %v63 = vpop.permute.xlu0 %62
    %vm66 = vcmask 130048
    %v67 = vsel %vm66, %v50, %v61
    %v68 = vsel %vm66, %v51, %v63
    %vm69 = vcmask 261120
    %70 = vst.msk [vmem:[#allocation2] sm:$0xff] %vm69, %v67
    %71 = vst.msk [vmem:[#allocation2 + $0x8] sm:$0xff] %vm69, %v68
    // Predicated region
    $region18: #{tpu_custom_call.1} parent=1 // pred_check
      _
    $region19: #{tpu_custom_call.1} parent=1 // pred_check_branch
      %73 = sbr.rel (0) target = $region21
    $region20: #{tpu_custom_call.1} parent=1 // pred_region
      %s75 = ssub.s32 256, 256
      %76 = vsyncadd [#allocation3], %s75
      %s77 = sshll.u32 [#allocation2], 4
      %s78 = int_to_ptr.vmem [resolvable:$true] %s77
      %83 = dma.vmem_to_hbm [thread:$0]  %s78, 256, %s4, [#allocation3], 128, 128, 8
    $region21: #{tpu_custom_call.1} parent=1 // pred_fallthru
      _
    // Predicated region
    $region22: #{tpu_custom_call.1} parent=1 // pred_check
      _
    $region23: #{tpu_custom_call.1} parent=1 // pred_check_branch
      %85 = sbr.rel (0) target = $region25
    $region24: #{tpu_custom_call.1} parent=1 // pred_region
      %86 = dma.done [#allocation3], 256
    $region25: #{tpu_custom_call.1} parent=1 // pred_fallthru
      _
    %87 = vsyncpa [#allocation3], 1

</llo_original>
